<compile_context>
chip_gen: v5e
topology: v5e:2x2
jax: 0.10.0
libtpu: 0.0.40
codegen_flags: <defaults>
</compile_context>

<pallas_src>
import functools

import jax
import jax.numpy as jnp
from jax.experimental import pallas as pl
from jax.experimental.pallas import tpu as pltpu


def _variable_attention_kernel(
    x_ref,      # (TB, N, D)   compute dtype
    wq_ref,     # (D, HE)      compute dtype
    bq_ref,     # (1, HE)      f32
    wk_ref,     # (D, HE)      compute dtype
    kbias_ref,  # (1, HE)      f32  ( = sum(wsum) * bk )
    wv_ref,     # (D, HE)      compute dtype
    bv_ref,     # (1, HE)      f32
    wsum_ref,   # (N, 1)       f32
    seg_ref,    # (HE, H)      compute dtype  per-head segment-sum matrix
    expn_ref,   # (H, HE)      compute dtype  per-head expansion matrix
    wo_ref,     # (HE, D)      compute dtype
    bo_ref,     # (1, D)       f32
    o_ref,      # (TB, D)      f32
    *,
    n_heads: int,
    d_keys: int,
):
    tb, n_vars, d_model = x_ref.shape
    he = wq_ref.shape[1]
    cdt = wq_ref.dtype
    scale = d_keys ** -0.5

    x3 = x_ref[...]                                   # (TB, N, D)
    x2 = x3.reshape(tb * n_vars, d_model)             # (TB*N, D)

    # ---- attention logits (summary projection folded into K) ----------------
    q = jnp.dot(x2, wq_ref[...],
                preferred_element_type=jnp.float32) + bq_ref[...]        # (TB*N, HE) f32

    # xbar[b] = sum_n wsum[n] * x[b, n, :]                       (TB, D) f32
    xbar = jnp.sum(x3.astype(jnp.float32) * wsum_ref[...], axis=1)
    # kbar[b] = xbar[b] @ Wk^T + sum(wsum) * bk                  (TB, HE) f32
    kbar = jnp.dot(xbar.astype(cdt), wk_ref[...],
                   preferred_element_type=jnp.float32) + kbias_ref[...]

    # s[b, n, h] = scale * <Q[b, n, h, :], kbar[b, h, :]>
    prod = q.reshape(tb, n_vars, he) * kbar[:, None, :]                  # (TB, N, HE) f32
    s = jnp.dot(prod.reshape(tb * n_vars, he).astype(cdt), seg_ref[...],
                preferred_element_type=jnp.float32) * scale              # (TB*N, H) f32
    s3 = s.reshape(tb, n_vars, n_heads)

    # ---- softmax over N (dim=-2 of the original (B, H, N, 1)), in f32 -------
    # summary_projection bias omitted: constant over N => shift-invariant.
    m = jnp.max(s3, axis=1, keepdims=True)
    e = jnp.exp(s3 - m)
    denom = jnp.sum(e, axis=1, keepdims=True)
    beta = e * pl.reciprocal(denom, approx=True)                          # (TB, N, H)

    # ---- weighted V reduction (V computed late -> smaller live set) ---------
    beta_full = jnp.dot(beta.reshape(tb * n_vars, n_heads).astype(cdt),
                        expn_ref[...],
                        preferred_element_type=jnp.float32)               # (TB*N, HE) f32
    v = jnp.dot(x2, wv_ref[...],
                preferred_element_type=jnp.float32) + bv_ref[...]         # (TB*N, HE) f32
    weighted = v * beta_full
    result = jnp.sum(weighted.reshape(tb, n_vars, he), axis=1)            # (TB, HE) f32

    # ---- output projection ---------------------------------------------------
    out = jnp.dot(result.astype(cdt), wo_ref[...],
                  preferred_element_type=jnp.float32) + bo_ref[...]       # (TB, D)
    o_ref[...] = out.astype(o_ref.dtype)


def _prepare_params(params, *, n_heads, d_keys, compute_dtype):
    """One-time host-side parameter massaging: transpose / fold / cast."""
    wq, bq, wk, bk, wv, bv, wsum, bsum, wo, bo = params
    del bsum  # constant over the softmax (N) axis -> exactly no effect (shift invariance)
    f32 = jnp.float32
    cdt = compute_dtype
    N = wsum.shape[1]

    wq_t = wq.T.astype(cdt)                                   # (D, HE)
    wk_t = wk.T.astype(cdt)                                   # (D, HE)
    wv_t = wv.T.astype(cdt)                                   # (D, HE)
    wo_t = wo.T.astype(cdt)                                   # (HE, D)
    bq_f = bq.astype(f32)                                     # (1, HE)
    bv_f = bv.astype(f32)                                     # (1, HE)
    kbias = jnp.sum(wsum.astype(f32)) * bk.astype(f32)        # (1, HE)
    bo_f = bo.astype(f32)                                     # (1, D)
    wsum_col = wsum.reshape(N, 1).astype(f32)                 # (N, 1)

    # head-membership matrices: seg[h*E + e, h] = 1 ; expn = seg^T
    head_ids = jnp.repeat(jnp.arange(n_heads), d_keys)                      # (HE,)
    seg = (head_ids[:, None] == jnp.arange(n_heads)[None, :]).astype(cdt)   # (HE, H)
    expn = seg.T                                                            # (H, HE)

    return (wq_t, bq_f, wk_t, kbias, wv_t, bv_f, wsum_col, seg, expn, wo_t, bo_f)


def _vmem_capacity_bytes():
    try:
        return int(pltpu.get_tpu_info().vmem_capacity_bytes)
    except Exception:
        return 128 * 1024 * 1024   # v5e/v6e; v7x has 64 MiB (only hit via get_tpu_info)


def _footprint_bytes(tb, n_vars, d_model, he, n_heads, cbytes, weight_buffers):
    """Rough per-grid-step VMEM footprint in bytes."""
    weights = (4 * d_model * he * cbytes                 # Wq, Wk, Wv, Wo
               + 2 * he * n_heads * cbytes               # seg + expn
               + (3 * he + 2 * d_model + n_vars) * 4)    # biases + wsum
    x_block = 2 * tb * n_vars * d_model * cbytes                           # double-buffered input
    live_f32 = tb * n_vars * (3 * he + d_model + 2 * n_heads) * 4          # q/v/beta_full + x_f32 + logits
    out_block = 2 * tb * d_model * 4
    return weight_buffers * weights + x_block + live_f32 + out_block


def _pick_tb(batch, n_vars, d_model, he, n_heads, cbytes, vmem_cap):
    """Pick a batch tile: layout-legal (TB % 8 == 0 or TB == B), VMEM-aware and,
    when batch allows it, leaving a grid of >= 2 (v7x megacore sharding)."""
    budget = int(0.70 * vmem_cap)
    candidates = [tb for tb in range(1, batch + 1)
                  if batch % tb == 0 and (tb % 8 == 0 or tb == batch)]
    row_cap = max(1, 2048 // max(n_vars, 1))   # bound rows/step even on big VMEM
    ok = [tb for tb in candidates
          if tb <= row_cap
          and _footprint_bytes(tb, n_vars, d_model, he, n_heads, cbytes, 2) <= budget]
    if not ok:
        ok = [min(candidates)]
    tb = max(ok)
    if batch // tb < 2:
        smaller = [t for t in ok if batch // t >= 2]
        if smaller:
            tb = max(smaller)
    return tb


def _vmem_limit_bytes(tb, n_vars, d_model, he, n_heads, cbytes, vmem_cap):
    need = _footprint_bytes(tb, n_vars, d_model, he, n_heads, cbytes, 2)
    need = int(1.25 * need) + (4 << 20)   # headroom for compiler temporaries
    return max(32 << 20, min(need, int(0.9 * vmem_cap)))


def _const_spec(shape, single_buffer):
    index_map = lambda b: (0,) * len(shape)
    if single_buffer:
        # Constant block index -> one resident copy suffices; halves weight VMEM
        # vs the default double-buffering.
        return pl.BlockSpec(shape, index_map, pipeline_mode=pl.Buffered(1))
    return pl.BlockSpec(shape, index_map)


def variable_attention(x, params, *, n_heads, d_keys, batch_tile=None,
                       compute_dtype=jnp.bfloat16):
    """x: (B, N, D) float32.  Returns (B, D) float32.

    compute_dtype: dtype fed to the MXU (bf16 = native fast path, f32 = exact)."""
    B, N, D = x.shape
    H = n_heads
    HE = n_heads * d_keys
    cbytes = jnp.dtype(compute_dtype).itemsize

    prep = _prepare_params(params, n_heads=n_heads, d_keys=d_keys,
                           compute_dtype=compute_dtype)
    x_c = x.astype(compute_dtype)

    vmem_cap = _vmem_capacity_bytes()
    TB = batch_tile if batch_tile is not None else _pick_tb(
        B, N, D, HE, H, cbytes, vmem_cap)
    assert B % TB == 0, (B, TB)
    vmem_limit = _vmem_limit_bytes(TB, N, D, HE, H, cbytes, vmem_cap)

    kernel = functools.partial(_variable_attention_kernel,
                               n_heads=n_heads, d_keys=d_keys)

    # Q/V projections + kbar + per-head reduce/expand + output projection.
    flops = 2 * B * HE * (2 * N * D + 2 * D + 2 * N * H)
    bytes_accessed = (x_c.size * cbytes
                      + sum(int(p.size) * p.dtype.itemsize for p in prep)
                      + B * D * 4)
    cost = pl.CostEstimate(flops=int(flops), transcendentals=int(B * N * H),
                           bytes_accessed=int(bytes_accessed))

    const_shapes = [(D, HE), (1, HE), (D, HE), (1, HE), (D, HE), (1, HE),
                    (N, 1), (HE, H), (H, HE), (HE, D), (1, D)]

    def call(single_buffer):
        in_specs = [pl.BlockSpec((TB, N, D), lambda b: (b, 0, 0))]
        in_specs += [_const_spec(s, single_buffer) for s in const_shapes]
        return pl.pallas_call(
            kernel,
            out_shape=jax.ShapeDtypeStruct((B, D), jnp.float32),
            grid_spec=pltpu.PrefetchScalarGridSpec(
                num_scalar_prefetch=0,
                grid=(B // TB,),
                in_specs=in_specs,
                out_specs=pl.BlockSpec((TB, D), lambda b: (b, 0)),
            ),
            compiler_params=pltpu.CompilerParams(
                dimension_semantics=("parallel",),
                vmem_limit_bytes=int(vmem_limit)),
            cost_estimate=cost,
        )(x_c, *prep)

    try:
        return call(single_buffer=True)
    except Exception:
        # pipeline_mode / pl.Buffered(1) not supported on this jax version:
        # fall back to default double-buffered constants.
        return call(single_buffer=False)


def variable_attention_ref(x, params, *, n_heads, d_keys):
    """Pure-JAX reference mirroring the PyTorch forward (eval mode)."""
    B, N, D = x.shape
    H, E = n_heads, d_keys
    wq, bq, wk, bk, wv, bv, wsum, bsum, wo, bo = params

    Q = (x @ wq.T + bq[0]).reshape(B, N, H, E)
    K = (x @ wk.T + bk[0]).reshape(B, N, H, E)
    V = (x @ wv.T + bv[0]).reshape(B, N, H, E)

    scale = 1.0 / jnp.sqrt(jnp.float32(E))
    scores = jnp.einsum('bnhd,bmhd->bhnm', Q, K)                 # (B,H,N,N)
    s = (scale * scores) @ wsum[0] + bsum[0, 0]                  # (B,H,N)
    beta = jax.nn.softmax(s, axis=-1)                            # softmax over N
    beta_cal = jnp.transpose(beta, (0, 2, 1))                    # (B,N,H)
    weighted = V * beta_cal[..., None]
    result = weighted.sum(axis=1)                                # (B,H,E)
    out = result.reshape(B, H * E) @ wo.T + bo[0]
    return out


def make_params(key, D, N, n_heads, d_keys):
    HE = n_heads * d_keys
    ks = jax.random.split(key, 10)
    std = 0.02
    wq = jax.random.normal(ks[0], (HE, D), jnp.float32) * std
    bq = jax.random.normal(ks[1], (1, HE), jnp.float32) * std
    wk = jax.random.normal(ks[2], (HE, D), jnp.float32) * std
    bk = jax.random.normal(ks[3], (1, HE), jnp.float32) * std
    wv = jax.random.normal(ks[4], (HE, D), jnp.float32) * std
    bv = jax.random.normal(ks[5], (1, HE), jnp.float32) * std
    wsum = jax.random.normal(ks[6], (1, N), jnp.float32) * std
    bsum = jax.random.normal(ks[7], (1, 1), jnp.float32) * std
    wo = jax.random.normal(ks[8], (D, HE), jnp.float32) * std
    bo = jax.random.normal(ks[9], (1, D), jnp.float32) * std
    return (wq, bq, wk, bk, wv, bv, wsum, bsum, wo, bo)


if __name__ == "__main__":
    # Small, self-consistent shapes.  The PyTorch module is only
    # shape-consistent when H * d_keys == D * n_heads, i.e. d_keys == D.
    B, N, D = 2, 8, 32
    n_heads = 2
    d_keys = D  # required so out_projection_layer (D*n_heads -> D) matches

    key = jax.random.PRNGKey(0)
    kx, kp = jax.random.split(key)
    x = jax.random.normal(kx, (B, N, D), jnp.float32)
    params = make_params(kp, D, N, n_heads, d_keys)

    ref = variable_attention_ref(x, params, n_heads=n_heads, d_keys=d_keys)

    # Exact path: f32 end to end (tight tolerance, FP reassociation of the
    # folded summary projection + EUP approx reciprocal only).
    out_f32 = jax.block_until_ready(
        variable_attention(x, params, n_heads=n_heads, d_keys=d_keys,
                           compute_dtype=jnp.float32))
    assert out_f32.shape == (B, D)
    assert jnp.allclose(out_f32, ref, atol=5e-4, rtol=5e-4), (
        f"f32 max abs err {jnp.max(jnp.abs(out_f32 - ref))}")

    # Fast path: bf16 MXU operands, f32 accumulation, f32 softmax.
    out_bf16 = jax.block_until_ready(
        variable_attention(x, params, n_heads=n_heads, d_keys=d_keys,
                           compute_dtype=jnp.bfloat16))
    assert out_bf16.shape == (B, D)
    assert jnp.allclose(out_bf16, ref, atol=5e-3, rtol=5e-2), (
        f"bf16 max abs err {jnp.max(jnp.abs(out_bf16 - ref))}")

    print("KERNEL_OK")
</pallas_src>

<mosaic_0001>
module attributes {stable_mosaic.version = 11 : i64} {
  func.func @_variable_attention_kernel(%arg0: i32, %arg1: memref<2x8x32xf32, #tpu.memory_space<vmem>>, %arg2: memref<32x64xf32, #tpu.memory_space<vmem>>, %arg3: memref<1x64xf32, #tpu.memory_space<vmem>>, %arg4: memref<32x64xf32, #tpu.memory_space<vmem>>, %arg5: memref<1x64xf32, #tpu.memory_space<vmem>>, %arg6: memref<32x64xf32, #tpu.memory_space<vmem>>, %arg7: memref<1x64xf32, #tpu.memory_space<vmem>>, %arg8: memref<8x1xf32, #tpu.memory_space<vmem>>, %arg9: memref<64x2xf32, #tpu.memory_space<vmem>>, %arg10: memref<2x64xf32, #tpu.memory_space<vmem>>, %arg11: memref<64x32xf32, #tpu.memory_space<vmem>>, %arg12: memref<1x32xf32, #tpu.memory_space<vmem>>, %arg13: memref<2x32xf32, #tpu.memory_space<vmem>>) attributes {dimension_semantics = [#tpu.dimension_semantics<parallel>], iteration_bounds = array<i64: 1>, scalar_prefetch = 0 : i64, scratch_operands = 0 : i64, tpu.core_type = #tpu.core_type<tc>, window_params = [{transform_indices = @transform_0, window_bounds = array<i64: 2, 8, 32>}, {pipeline_mode = #tpu.pipeline_mode<synchronous>, transform_indices = @transform_1, window_bounds = array<i64: 32, 64>}, {pipeline_mode = #tpu.pipeline_mode<synchronous>, transform_indices = @transform_2, window_bounds = array<i64: 1, 64>}, {pipeline_mode = #tpu.pipeline_mode<synchronous>, transform_indices = @transform_3, window_bounds = array<i64: 32, 64>}, {pipeline_mode = #tpu.pipeline_mode<synchronous>, transform_indices = @transform_4, window_bounds = array<i64: 1, 64>}, {pipeline_mode = #tpu.pipeline_mode<synchronous>, transform_indices = @transform_5, window_bounds = array<i64: 32, 64>}, {pipeline_mode = #tpu.pipeline_mode<synchronous>, transform_indices = @transform_6, window_bounds = array<i64: 1, 64>}, {pipeline_mode = #tpu.pipeline_mode<synchronous>, transform_indices = @transform_7, window_bounds = array<i64: 8, 1>}, {pipeline_mode = #tpu.pipeline_mode<synchronous>, transform_indices = @transform_8, window_bounds = array<i64: 64, 2>}, {pipeline_mode = #tpu.pipeline_mode<synchronous>, transform_indices = @transform_9, window_bounds = array<i64: 2, 64>}, {pipeline_mode = #tpu.pipeline_mode<synchronous>, transform_indices = @transform_10, window_bounds = array<i64: 64, 32>}, {pipeline_mode = #tpu.pipeline_mode<synchronous>, transform_indices = @transform_11, window_bounds = array<i64: 1, 32>}, {transform_indices = @transform_12, window_bounds = array<i64: 2, 32>}]} {
    %c0 = arith.constant 0 : index
    %c0_0 = arith.constant 0 : index
    %c0_1 = arith.constant 0 : index
    %0 = vector.load %arg1[%c0, %c0_0, %c0_1] : memref<2x8x32xf32, #tpu.memory_space<vmem>>, vector<2x8x32xf32>
    %1 = vector.shape_cast %0 : vector<2x8x32xf32> to vector<16x32xf32>
    %c0_2 = arith.constant 0 : index
    %c0_3 = arith.constant 0 : index
    %2 = vector.load %arg2[%c0_2, %c0_3] : memref<32x64xf32, #tpu.memory_space<vmem>>, vector<32x64xf32>
    %cst = arith.constant dense<0.000000e+00> : vector<16x64xf32>
    %3 = tpu.matmul %1, %2, %cst {dimension_numbers = #tpu.dot_dimension_numbers<[1], [0], [0], [1], [0, 0, 1, 1], [], []>} : vector<16x32xf32>, vector<32x64xf32>, vector<16x64xf32> -> vector<16x64xf32>
    %c0_4 = arith.constant 0 : index
    %c0_5 = arith.constant 0 : index
    %4 = vector.load %arg3[%c0_4, %c0_5] : memref<1x64xf32, #tpu.memory_space<vmem>>, vector<1x64xf32>
    %5 = vector.broadcast %4 : vector<1x64xf32> to vector<16x64xf32>
    %6 = arith.addf %3, %5 : vector<16x64xf32>
    %c0_6 = arith.constant 0 : index
    %c0_7 = arith.constant 0 : index
    %7 = vector.load %arg8[%c0_6, %c0_7] : memref<8x1xf32, #tpu.memory_space<vmem>>, vector<8x1xf32>
    %8 = vector.shape_cast %7 : vector<8x1xf32> to vector<1x8x1xf32>
    %9 = vector.broadcast %8 : vector<1x8x1xf32> to vector<2x8x32xf32>
    %10 = arith.mulf %0, %9 : vector<2x8x32xf32>
    %cst_8 = arith.constant dense<0.000000e+00> : vector<2x32xf32>
    %11 = vector.multi_reduction <add>, %10, %cst_8 [1] : vector<2x8x32xf32> to vector<2x32xf32>
    %c0_9 = arith.constant 0 : index
    %c0_10 = arith.constant 0 : index
    %12 = vector.load %arg4[%c0_9, %c0_10] : memref<32x64xf32, #tpu.memory_space<vmem>>, vector<32x64xf32>
    %cst_11 = arith.constant dense<0.000000e+00> : vector<2x64xf32>
    %13 = tpu.matmul %11, %12, %cst_11 {dimension_numbers = #tpu.dot_dimension_numbers<[1], [0], [0], [1], [0, 0, 1, 1], [], []>} : vector<2x32xf32>, vector<32x64xf32>, vector<2x64xf32> -> vector<2x64xf32>
    %c0_12 = arith.constant 0 : index
    %c0_13 = arith.constant 0 : index
    %14 = vector.load %arg5[%c0_12, %c0_13] : memref<1x64xf32, #tpu.memory_space<vmem>>, vector<1x64xf32>
    %15 = vector.broadcast %14 : vector<1x64xf32> to vector<2x64xf32>
    %16 = arith.addf %13, %15 : vector<2x64xf32>
    %17 = vector.shape_cast %6 : vector<16x64xf32> to vector<2x8x64xf32>
    %18 = vector.shape_cast %16 : vector<2x64xf32> to vector<2x1x64xf32>
    %19 = vector.broadcast %18 : vector<2x1x64xf32> to vector<2x8x64xf32>
    %20 = arith.mulf %17, %19 : vector<2x8x64xf32>
    %21 = vector.shape_cast %20 : vector<2x8x64xf32> to vector<16x64xf32>
    %c0_14 = arith.constant 0 : index
    %c0_15 = arith.constant 0 : index
    %22 = vector.load %arg9[%c0_14, %c0_15] : memref<64x2xf32, #tpu.memory_space<vmem>>, vector<64x2xf32>
    %cst_16 = arith.constant dense<0.000000e+00> : vector<16x2xf32>
    %23 = tpu.matmul %21, %22, %cst_16 {dimension_numbers = #tpu.dot_dimension_numbers<[1], [0], [0], [1], [0, 0, 1, 1], [], []>} : vector<16x64xf32>, vector<64x2xf32>, vector<16x2xf32> -> vector<16x2xf32>
    %cst_17 = arith.constant 0.176776692 : f32
    %24 = vector.broadcast %cst_17 : f32 to vector<16x2xf32>
    %25 = arith.mulf %23, %24 : vector<16x2xf32>
    %26 = vector.shape_cast %25 : vector<16x2xf32> to vector<2x8x2xf32>
    %cst_18 = arith.constant dense<0xFF800000> : vector<2x2xf32>
    %27 = vector.multi_reduction <maximumf>, %26, %cst_18 [1] : vector<2x8x2xf32> to vector<2x2xf32>
    %28 = vector.shape_cast %27 : vector<2x2xf32> to vector<2x1x2xf32>
    %29 = vector.broadcast %28 : vector<2x1x2xf32> to vector<2x8x2xf32>
    %30 = arith.subf %26, %29 : vector<2x8x2xf32>
    %31 = math.exp %30 : vector<2x8x2xf32>
    %cst_19 = arith.constant dense<0.000000e+00> : vector<2x2xf32>
    %32 = vector.multi_reduction <add>, %31, %cst_19 [1] : vector<2x8x2xf32> to vector<2x2xf32>
    %33 = vector.shape_cast %32 : vector<2x2xf32> to vector<2x1x2xf32>
    %34 = tpu.reciprocal %33 {approx = true} : vector<2x1x2xf32> -> vector<2x1x2xf32>
    %35 = vector.broadcast %34 : vector<2x1x2xf32> to vector<2x8x2xf32>
    %36 = arith.mulf %31, %35 : vector<2x8x2xf32>
    %37 = vector.shape_cast %36 : vector<2x8x2xf32> to vector<16x2xf32>
    %c0_20 = arith.constant 0 : index
    %c0_21 = arith.constant 0 : index
    %38 = vector.load %arg10[%c0_20, %c0_21] : memref<2x64xf32, #tpu.memory_space<vmem>>, vector<2x64xf32>
    %cst_22 = arith.constant dense<0.000000e+00> : vector<16x64xf32>
    %39 = tpu.matmul %37, %38, %cst_22 {dimension_numbers = #tpu.dot_dimension_numbers<[1], [0], [0], [1], [0, 0, 1, 1], [], []>} : vector<16x2xf32>, vector<2x64xf32>, vector<16x64xf32> -> vector<16x64xf32>
    %c0_23 = arith.constant 0 : index
    %c0_24 = arith.constant 0 : index
    %40 = vector.load %arg6[%c0_23, %c0_24] : memref<32x64xf32, #tpu.memory_space<vmem>>, vector<32x64xf32>
    %cst_25 = arith.constant dense<0.000000e+00> : vector<16x64xf32>
    %41 = tpu.matmul %1, %40, %cst_25 {dimension_numbers = #tpu.dot_dimension_numbers<[1], [0], [0], [1], [0, 0, 1, 1], [], []>} : vector<16x32xf32>, vector<32x64xf32>, vector<16x64xf32> -> vector<16x64xf32>
    %c0_26 = arith.constant 0 : index
    %c0_27 = arith.constant 0 : index
    %42 = vector.load %arg7[%c0_26, %c0_27] : memref<1x64xf32, #tpu.memory_space<vmem>>, vector<1x64xf32>
    %43 = vector.broadcast %42 : vector<1x64xf32> to vector<16x64xf32>
    %44 = arith.addf %41, %43 : vector<16x64xf32>
    %45 = arith.mulf %44, %39 : vector<16x64xf32>
    %46 = vector.shape_cast %45 : vector<16x64xf32> to vector<2x8x64xf32>
    %cst_28 = arith.constant dense<0.000000e+00> : vector<2x64xf32>
    %47 = vector.multi_reduction <add>, %46, %cst_28 [1] : vector<2x8x64xf32> to vector<2x64xf32>
    %c0_29 = arith.constant 0 : index
    %c0_30 = arith.constant 0 : index
    %48 = vector.load %arg11[%c0_29, %c0_30] : memref<64x32xf32, #tpu.memory_space<vmem>>, vector<64x32xf32>
    %cst_31 = arith.constant dense<0.000000e+00> : vector<2x32xf32>
    %49 = tpu.matmul %47, %48, %cst_31 {dimension_numbers = #tpu.dot_dimension_numbers<[1], [0], [0], [1], [0, 0, 1, 1], [], []>} : vector<2x64xf32>, vector<64x32xf32>, vector<2x32xf32> -> vector<2x32xf32>
    %c0_32 = arith.constant 0 : index
    %c0_33 = arith.constant 0 : index
    %50 = vector.load %arg12[%c0_32, %c0_33] : memref<1x32xf32, #tpu.memory_space<vmem>>, vector<1x32xf32>
    %51 = vector.broadcast %50 : vector<1x32xf32> to vector<2x32xf32>
    %52 = arith.addf %49, %51 : vector<2x32xf32>
    %c0_34 = arith.constant 0 : index
    %c0_35 = arith.constant 0 : index
    %53 = vector.load %arg13[%c0_34, %c0_35] : memref<2x32xf32, #tpu.memory_space<vmem>>, vector<2x32xf32>
    tpu.vector_store %arg13[%c0_34, %c0_35], %52 {strides = array<i32>} : memref<2x32xf32, #tpu.memory_space<vmem>>, vector<2x32xf32>,
    return
  }
  func.func @transform_0(%arg0: i32) -> (i32, i32, i32) {
    %c0_i32 = arith.constant 0 : i32
    %c0_i32_0 = arith.constant 0 : i32
    %c0_i32_1 = arith.constant 0 : i32
    return %arg0, %c0_i32, %c0_i32_0 : i32, i32, i32
  }
  func.func @transform_1(%arg0: i32) -> (i32, i32) {
    %c0_i32 = arith.constant 0 : i32
    %c0_i32_0 = arith.constant 0 : i32
    %c0_i32_1 = arith.constant 0 : i32
    return %c0_i32, %c0_i32_0 : i32, i32
  }
  func.func @transform_2(%arg0: i32) -> (i32, i32) {
    %c0_i32 = arith.constant 0 : i32
    %c0_i32_0 = arith.constant 0 : i32
    %c0_i32_1 = arith.constant 0 : i32
    return %c0_i32, %c0_i32_0 : i32, i32
  }
  func.func @transform_3(%arg0: i32) -> (i32, i32) {
    %c0_i32 = arith.constant 0 : i32
    %c0_i32_0 = arith.constant 0 : i32
    %c0_i32_1 = arith.constant 0 : i32
    return %c0_i32, %c0_i32_0 : i32, i32
  }
  func.func @transform_4(%arg0: i32) -> (i32, i32) {
    %c0_i32 = arith.constant 0 : i32
    %c0_i32_0 = arith.constant 0 : i32
    %c0_i32_1 = arith.constant 0 : i32
    return %c0_i32, %c0_i32_0 : i32, i32
  }
  func.func @transform_5(%arg0: i32) -> (i32, i32) {
    %c0_i32 = arith.constant 0 : i32
    %c0_i32_0 = arith.constant 0 : i32
    %c0_i32_1 = arith.constant 0 : i32
    return %c0_i32, %c0_i32_0 : i32, i32
  }
  func.func @transform_6(%arg0: i32) -> (i32, i32) {
    %c0_i32 = arith.constant 0 : i32
    %c0_i32_0 = arith.constant 0 : i32
    %c0_i32_1 = arith.constant 0 : i32
    return %c0_i32, %c0_i32_0 : i32, i32
  }
  func.func @transform_7(%arg0: i32) -> (i32, i32) {
    %c0_i32 = arith.constant 0 : i32
    %c0_i32_0 = arith.constant 0 : i32
    %c0_i32_1 = arith.constant 0 : i32
    return %c0_i32, %c0_i32_0 : i32, i32
  }
  func.func @transform_8(%arg0: i32) -> (i32, i32) {
    %c0_i32 = arith.constant 0 : i32
    %c0_i32_0 = arith.constant 0 : i32
    %c0_i32_1 = arith.constant 0 : i32
    return %c0_i32, %c0_i32_0 : i32, i32
  }
  func.func @transform_9(%arg0: i32) -> (i32, i32) {
    %c0_i32 = arith.constant 0 : i32
    %c0_i32_0 = arith.constant 0 : i32
    %c0_i32_1 = arith.constant 0 : i32
    return %c0_i32, %c0_i32_0 : i32, i32
  }
  func.func @transform_10(%arg0: i32) -> (i32, i32) {
    %c0_i32 = arith.constant 0 : i32
    %c0_i32_0 = arith.constant 0 : i32
    %c0_i32_1 = arith.constant 0 : i32
    return %c0_i32, %c0_i32_0 : i32, i32
  }
  func.func @transform_11(%arg0: i32) -> (i32, i32) {
    %c0_i32 = arith.constant 0 : i32
    %c0_i32_0 = arith.constant 0 : i32
    %c0_i32_1 = arith.constant 0 : i32
    return %c0_i32, %c0_i32_0 : i32, i32
  }
  func.func @transform_12(%arg0: i32) -> (i32, i32) {
    %c0_i32 = arith.constant 0 : i32
    %c0_i32_0 = arith.constant 0 : i32
    return %arg0, %c0_i32 : i32, i32
  }
}

module attributes {stable_mosaic.version = 11 : i64} {
  func.func @_variable_attention_kernel(%arg0: i32, %arg1: memref<2x8x32xf32, #tpu.memory_space<vmem>>, %arg2: memref<32x64xf32, #tpu.memory_space<vmem>>, %arg3: memref<1x64xf32, #tpu.memory_space<vmem>>, %arg4: memref<32x64xf32, #tpu.memory_space<vmem>>, %arg5: memref<1x64xf32, #tpu.memory_space<vmem>>, %arg6: memref<32x64xf32, #tpu.memory_space<vmem>>, %arg7: memref<1x64xf32, #tpu.memory_space<vmem>>, %arg8: memref<8x1xf32, #tpu.memory_space<vmem>>, %arg9: memref<64x2xf32, #tpu.memory_space<vmem>>, %arg10: memref<2x64xf32, #tpu.memory_space<vmem>>, %arg11: memref<64x32xf32, #tpu.memory_space<vmem>>, %arg12: memref<1x32xf32, #tpu.memory_space<vmem>>, %arg13: memref<2x32xf32, #tpu.memory_space<vmem>>) attributes {dimension_semantics = [#tpu.dimension_semantics<parallel>], iteration_bounds = array<i64: 1>, scalar_prefetch = 0 : i64, scratch_operands = 0 : i64, tpu.core_type = #tpu.core_type<tc>, window_params = [{transform_indices = @transform_0, window_bounds = array<i64: 2, 8, 32>}, {pipeline_mode = #tpu.pipeline_mode<synchronous>, transform_indices = @transform_1, window_bounds = array<i64: 32, 64>}, {pipeline_mode = #tpu.pipeline_mode<synchronous>, transform_indices = @transform_2, window_bounds = array<i64: 1, 64>}, {pipeline_mode = #tpu.pipeline_mode<synchronous>, transform_indices = @transform_3, window_bounds = array<i64: 32, 64>}, {pipeline_mode = #tpu.pipeline_mode<synchronous>, transform_indices = @transform_4, window_bounds = array<i64: 1, 64>}, {pipeline_mode = #tpu.pipeline_mode<synchronous>, transform_indices = @transform_5, window_bounds = array<i64: 32, 64>}, {pipeline_mode = #tpu.pipeline_mode<synchronous>, transform_indices = @transform_6, window_bounds = array<i64: 1, 64>}, {pipeline_mode = #tpu.pipeline_mode<synchronous>, transform_indices = @transform_7, window_bounds = array<i64: 8, 1>}, {pipeline_mode = #tpu.pipeline_mode<synchronous>, transform_indices = @transform_8, window_bounds = array<i64: 64, 2>}, {pipeline_mode = #tpu.pipeline_mode<synchronous>, transform_indices = @transform_9, window_bounds = array<i64: 2, 64>}, {pipeline_mode = #tpu.pipeline_mode<synchronous>, transform_indices = @transform_10, window_bounds = array<i64: 64, 32>}, {pipeline_mode = #tpu.pipeline_mode<synchronous>, transform_indices = @transform_11, window_bounds = array<i64: 1, 32>}, {transform_indices = @transform_12, window_bounds = array<i64: 2, 32>}]} {
    %c0 = arith.constant 0 : index
    %c0_0 = arith.constant 0 : index
    %c0_1 = arith.constant 0 : index
    %0 = vector.load %arg1[%c0, %c0_0, %c0_1] : memref<2x8x32xf32, #tpu.memory_space<vmem>>, vector<2x8x32xf32>
    %1 = vector.shape_cast %0 : vector<2x8x32xf32> to vector<16x32xf32>
    %c0_2 = arith.constant 0 : index
    %c0_3 = arith.constant 0 : index
    %2 = vector.load %arg2[%c0_2, %c0_3] : memref<32x64xf32, #tpu.memory_space<vmem>>, vector<32x64xf32>
    %cst = arith.constant dense<0.000000e+00> : vector<16x64xf32>
    %3 = tpu.matmul %1, %2, %cst {dimension_numbers = #tpu.dot_dimension_numbers<[1], [0], [0], [1], [0, 0, 1, 1], [], []>} : vector<16x32xf32>, vector<32x64xf32>, vector<16x64xf32> -> vector<16x64xf32>
    %c0_4 = arith.constant 0 : index
    %c0_5 = arith.constant 0 : index
    %4 = vector.load %arg3[%c0_4, %c0_5] : memref<1x64xf32, #tpu.memory_space<vmem>>, vector<1x64xf32>
    %5 = vector.broadcast %4 : vector<1x64xf32> to vector<16x64xf32>
    %6 = arith.addf %3, %5 : vector<16x64xf32>
    %c0_6 = arith.constant 0 : index
    %c0_7 = arith.constant 0 : index
    %7 = vector.load %arg8[%c0_6, %c0_7] : memref<8x1xf32, #tpu.memory_space<vmem>>, vector<8x1xf32>
    %8 = vector.shape_cast %7 : vector<8x1xf32> to vector<1x8x1xf32>
    %9 = vector.broadcast %8 : vector<1x8x1xf32> to vector<2x8x32xf32>
    %10 = arith.mulf %0, %9 : vector<2x8x32xf32>
    %cst_8 = arith.constant dense<0.000000e+00> : vector<2x32xf32>
    %11 = vector.multi_reduction <add>, %10, %cst_8 [1] : vector<2x8x32xf32> to vector<2x32xf32>
    %c0_9 = arith.constant 0 : index
    %c0_10 = arith.constant 0 : index
    %12 = vector.load %arg4[%c0_9, %c0_10] : memref<32x64xf32, #tpu.memory_space<vmem>>, vector<32x64xf32>
    %cst_11 = arith.constant dense<0.000000e+00> : vector<2x64xf32>
    %13 = tpu.matmul %11, %12, %cst_11 {dimension_numbers = #tpu.dot_dimension_numbers<[1], [0], [0], [1], [0, 0, 1, 1], [], []>} : vector<2x32xf32>, vector<32x64xf32>, vector<2x64xf32> -> vector<2x64xf32>
    %c0_12 = arith.constant 0 : index
    %c0_13 = arith.constant 0 : index
    %14 = vector.load %arg5[%c0_12, %c0_13] : memref<1x64xf32, #tpu.memory_space<vmem>>, vector<1x64xf32>
    %15 = vector.broadcast %14 : vector<1x64xf32> to vector<2x64xf32>
    %16 = arith.addf %13, %15 : vector<2x64xf32>
    %17 = vector.shape_cast %6 : vector<16x64xf32> to vector<2x8x64xf32>
    %18 = vector.shape_cast %16 : vector<2x64xf32> to vector<2x1x64xf32>
    %19 = vector.broadcast %18 : vector<2x1x64xf32> to vector<2x8x64xf32>
    %20 = arith.mulf %17, %19 : vector<2x8x64xf32>
    %21 = vector.shape_cast %20 : vector<2x8x64xf32> to vector<16x64xf32>
    %c0_14 = arith.constant 0 : index
    %c0_15 = arith.constant 0 : index
    %22 = vector.load %arg9[%c0_14, %c0_15] : memref<64x2xf32, #tpu.memory_space<vmem>>, vector<64x2xf32>
    %cst_16 = arith.constant dense<0.000000e+00> : vector<16x2xf32>
    %23 = tpu.matmul %21, %22, %cst_16 {dimension_numbers = #tpu.dot_dimension_numbers<[1], [0], [0], [1], [0, 0, 1, 1], [], []>} : vector<16x64xf32>, vector<64x2xf32>, vector<16x2xf32> -> vector<16x2xf32>
    %cst_17 = arith.constant 0.176776692 : f32
    %24 = vector.broadcast %cst_17 : f32 to vector<16x2xf32>
    %25 = arith.mulf %23, %24 : vector<16x2xf32>
    %26 = vector.shape_cast %25 : vector<16x2xf32> to vector<2x8x2xf32>
    %cst_18 = arith.constant dense<0xFF800000> : vector<2x2xf32>
    %27 = vector.multi_reduction <maximumf>, %26, %cst_18 [1] : vector<2x8x2xf32> to vector<2x2xf32>
    %28 = vector.shape_cast %27 : vector<2x2xf32> to vector<2x1x2xf32>
    %29 = vector.broadcast %28 : vector<2x1x2xf32> to vector<2x8x2xf32>
    %30 = arith.subf %26, %29 : vector<2x8x2xf32>
    %31 = math.exp %30 : vector<2x8x2xf32>
    %cst_19 = arith.constant dense<0.000000e+00> : vector<2x2xf32>
    %32 = vector.multi_reduction <add>, %31, %cst_19 [1] : vector<2x8x2xf32> to vector<2x2xf32>
    %33 = vector.shape_cast %32 : vector<2x2xf32> to vector<2x1x2xf32>
    %34 = tpu.reciprocal %33 {approx = true} : vector<2x1x2xf32> -> vector<2x1x2xf32>
    %35 = vector.broadcast %34 : vector<2x1x2xf32> to vector<2x8x2xf32>
    %36 = arith.mulf %31, %35 : vector<2x8x2xf32>
    %37 = vector.shape_cast %36 : vector<2x8x2xf32> to vector<16x2xf32>
    %c0_20 = arith.constant 0 : index
    %c0_21 = arith.constant 0 : index
    %38 = vector.load %arg10[%c0_20, %c0_21] : memref<2x64xf32, #tpu.memory_space<vmem>>, vector<2x64xf32>
    %cst_22 = arith.constant dense<0.000000e+00> : vector<16x64xf32>
    %39 = tpu.matmul %37, %38, %cst_22 {dimension_numbers = #tpu.dot_dimension_numbers<[1], [0], [0], [1], [0, 0, 1, 1], [], []>} : vector<16x2xf32>, vector<2x64xf32>, vector<16x64xf32> -> vector<16x64xf32>
    %c0_23 = arith.constant 0 : index
    %c0_24 = arith.constant 0 : index
    %40 = vector.load %arg6[%c0_23, %c0_24] : memref<32x64xf32, #tpu.memory_space<vmem>>, vector<32x64xf32>
    %cst_25 = arith.constant dense<0.000000e+00> : vector<16x64xf32>
    %41 = tpu.matmul %1, %40, %cst_25 {dimension_numbers = #tpu.dot_dimension_numbers<[1], [0], [0], [1], [0, 0, 1, 1], [], []>} : vector<16x32xf32>, vector<32x64xf32>, vector<16x64xf32> -> vector<16x64xf32>
    %c0_26 = arith.constant 0 : index
    %c0_27 = arith.constant 0 : index
    %42 = vector.load %arg7[%c0_26, %c0_27] : memref<1x64xf32, #tpu.memory_space<vmem>>, vector<1x64xf32>
    %43 = vector.broadcast %42 : vector<1x64xf32> to vector<16x64xf32>
    %44 = arith.addf %41, %43 : vector<16x64xf32>
    %45 = arith.mulf %44, %39 : vector<16x64xf32>
    %46 = vector.shape_cast %45 : vector<16x64xf32> to vector<2x8x64xf32>
    %cst_28 = arith.constant dense<0.000000e+00> : vector<2x64xf32>
    %47 = vector.multi_reduction <add>, %46, %cst_28 [1] : vector<2x8x64xf32> to vector<2x64xf32>
    %c0_29 = arith.constant 0 : index
    %c0_30 = arith.constant 0 : index
    %48 = vector.load %arg11[%c0_29, %c0_30] : memref<64x32xf32, #tpu.memory_space<vmem>>, vector<64x32xf32>
    %cst_31 = arith.constant dense<0.000000e+00> : vector<2x32xf32>
    %49 = tpu.matmul %47, %48, %cst_31 {dimension_numbers = #tpu.dot_dimension_numbers<[1], [0], [0], [1], [0, 0, 1, 1], [], []>} : vector<2x64xf32>, vector<64x32xf32>, vector<2x32xf32> -> vector<2x32xf32>
    %c0_32 = arith.constant 0 : index
    %c0_33 = arith.constant 0 : index
    %50 = vector.load %arg12[%c0_32, %c0_33] : memref<1x32xf32, #tpu.memory_space<vmem>>, vector<1x32xf32>
    %51 = vector.broadcast %50 : vector<1x32xf32> to vector<2x32xf32>
    %52 = arith.addf %49, %51 : vector<2x32xf32>
    %c0_34 = arith.constant 0 : index
    %c0_35 = arith.constant 0 : index
    %53 = vector.load %arg13[%c0_34, %c0_35] : memref<2x32xf32, #tpu.memory_space<vmem>>, vector<2x32xf32>
    tpu.vector_store %arg13[%c0_34, %c0_35], %52 {strides = array<i32>} : memref<2x32xf32, #tpu.memory_space<vmem>>, vector<2x32xf32>,
    return
  }
  func.func @transform_0(%arg0: i32) -> (i32, i32, i32) {
    %c0_i32 = arith.constant 0 : i32
    %c0_i32_0 = arith.constant 0 : i32
    %c0_i32_1 = arith.constant 0 : i32
    return %arg0, %c0_i32, %c0_i32_0 : i32, i32, i32
  }
  func.func @transform_1(%arg0: i32) -> (i32, i32) {
    %c0_i32 = arith.constant 0 : i32
    %c0_i32_0 = arith.constant 0 : i32
    %c0_i32_1 = arith.constant 0 : i32
    return %c0_i32, %c0_i32_0 : i32, i32
  }
  func.func @transform_2(%arg0: i32) -> (i32, i32) {
    %c0_i32 = arith.constant 0 : i32
    %c0_i32_0 = arith.constant 0 : i32
    %c0_i32_1 = arith.constant 0 : i32
    return %c0_i32, %c0_i32_0 : i32, i32
  }
  func.func @transform_3(%arg0: i32) -> (i32, i32) {
    %c0_i32 = arith.constant 0 : i32
    %c0_i32_0 = arith.constant 0 : i32
    %c0_i32_1 = arith.constant 0 : i32
    return %c0_i32, %c0_i32_0 : i32, i32
  }
  func.func @transform_4(%arg0: i32) -> (i32, i32) {
    %c0_i32 = arith.constant 0 : i32
    %c0_i32_0 = arith.constant 0 : i32
    %c0_i32_1 = arith.constant 0 : i32
    return %c0_i32, %c0_i32_0 : i32, i32
  }
  func.func @transform_5(%arg0: i32) -> (i32, i32) {
    %c0_i32 = arith.constant 0 : i32
    %c0_i32_0 = arith.constant 0 : i32
    %c0_i32_1 = arith.constant 0 : i32
    return %c0_i32, %c0_i32_0 : i32, i32
  }
  func.func @transform_6(%arg0: i32) -> (i32, i32) {
    %c0_i32 = arith.constant 0 : i32
    %c0_i32_0 = arith.constant 0 : i32
    %c0_i32_1 = arith.constant 0 : i32
    return %c0_i32, %c0_i32_0 : i32, i32
  }
  func.func @transform_7(%arg0: i32) -> (i32, i32) {
    %c0_i32 = arith.constant 0 : i32
    %c0_i32_0 = arith.constant 0 : i32
    %c0_i32_1 = arith.constant 0 : i32
    return %c0_i32, %c0_i32_0 : i32, i32
  }
  func.func @transform_8(%arg0: i32) -> (i32, i32) {
    %c0_i32 = arith.constant 0 : i32
    %c0_i32_0 = arith.constant 0 : i32
    %c0_i32_1 = arith.constant 0 : i32
    return %c0_i32, %c0_i32_0 : i32, i32
  }
  func.func @transform_9(%arg0: i32) -> (i32, i32) {
    %c0_i32 = arith.constant 0 : i32
    %c0_i32_0 = arith.constant 0 : i32
    %c0_i32_1 = arith.constant 0 : i32
    return %c0_i32, %c0_i32_0 : i32, i32
  }
  func.func @transform_10(%arg0: i32) -> (i32, i32) {
    %c0_i32 = arith.constant 0 : i32
    %c0_i32_0 = arith.constant 0 : i32
    %c0_i32_1 = arith.constant 0 : i32
    return %c0_i32, %c0_i32_0 : i32, i32
  }
  func.func @transform_11(%arg0: i32) -> (i32, i32) {
    %c0_i32 = arith.constant 0 : i32
    %c0_i32_0 = arith.constant 0 : i32
    %c0_i32_1 = arith.constant 0 : i32
    return %c0_i32, %c0_i32_0 : i32, i32
  }
  func.func @transform_12(%arg0: i32) -> (i32, i32) {
    %c0_i32 = arith.constant 0 : i32
    %c0_i32_0 = arith.constant 0 : i32
    return %arg0, %c0_i32 : i32, i32
  }
}

</mosaic_0001>

<llo_original>
// kernel: tpu_custom_call.1
$region0: #{tpu_custom_call.1}
  #allocation0 [shape = 'u32[]', space=smem, size = 0x4, offset = 0x4, fixed_abs, tag = 'smem constant byte address 0x4 - core index']
  #allocation1 [shape = 'u32[72,128]{1,0:T(1,128)}', space=vmem, size = 0x9000, scoped, tag = 'internal scratch']
  %s0 = inlined_call_operand.vmem [shape: f32[2,8,32], index: 0, kind: input, shape index: {}]
  %s1 = inlined_call_operand.vmem [shape: f32[32,64], index: 1, kind: input, shape index: {}]
  %s2 = inlined_call_operand.vmem [shape: f32[1,64], index: 2, kind: input, shape index: {}]
  %s3 = inlined_call_operand.vmem [shape: f32[32,64], index: 3, kind: input, shape index: {}]
  %s4 = inlined_call_operand.vmem [shape: f32[1,64], index: 4, kind: input, shape index: {}]
  %s5 = inlined_call_operand.vmem [shape: f32[32,64], index: 5, kind: input, shape index: {}]
  %s6 = inlined_call_operand.vmem [shape: f32[1,64], index: 6, kind: input, shape index: {}]
  %s7 = inlined_call_operand.vmem [shape: f32[8,1], index: 7, kind: input, shape index: {}]
  %s8 = inlined_call_operand.vmem [shape: f32[64,2], index: 8, kind: input, shape index: {}]
  %s9 = inlined_call_operand.vmem [shape: f32[2,64], index: 9, kind: input, shape index: {}]
  %s10 = inlined_call_operand.vmem [shape: f32[64,32], index: 10, kind: input, shape index: {}]
  %s11 = inlined_call_operand.vmem [shape: f32[1,32], index: 11, kind: input, shape index: {}]
  %s12 = inlined_call_operand.hbm [shape: f32[2,32], index: 12, kind: output, shape index: {}]
  %s13 = sld [smem:[#allocation0]]
  $region58: #{tpu_custom_call.1} parent=0
    _
  %s15 = ssub.s32 1, %s13
  %s16 = scalar_select 0, %s15, %s13
  $region1: #{tpu_custom_call.1} parent=0
    #allocation2 [shape = 'u8[1024]{0}', space=vmem, size = 0x400, scoped, tag = 'output window, operand 0, single buffered']
    #allocation3 [shape = 's32[1]{0}', space=sflag, size = 0x4, scoped, tag = 'scoped memory for tpu_custom_call.1']
    %17 = vsyncpa [#allocation3], 0
    // Predicated region
    $region2: #{tpu_custom_call.1} parent=1 // pred_check
      _
    $region3: #{tpu_custom_call.1} parent=1 // pred_check_branch
      %19 = sbr.rel (0) target = $region5
    $region4: #{tpu_custom_call.1} parent=1 // pred_region
      _
    $region5: #{tpu_custom_call.1} parent=1 // pred_fallthru
      _
    // Predicated region
    $region6: #{tpu_custom_call.1} parent=1 // pred_check
      _
    $region7: #{tpu_custom_call.1} parent=1 // pred_check_branch
      %21 = sbr.rel (0) target = $region9
    $region8: #{tpu_custom_call.1} parent=1 // pred_region
      _
    $region9: #{tpu_custom_call.1} parent=1 // pred_fallthru
      _
    // Predicated region
    $region10: #{tpu_custom_call.1} parent=1 // pred_check
      _
    $region11: #{tpu_custom_call.1} parent=1 // pred_check_branch
      %23 = sbr.rel (0) target = $region13
    $region12: #{tpu_custom_call.1} parent=1 // pred_region
      _
    $region13: #{tpu_custom_call.1} parent=1 // pred_fallthru
      _
    // Predicated region
    $region14: #{tpu_custom_call.1} parent=1 // pred_check
      _
    $region15: #{tpu_custom_call.1} parent=1 // pred_check_branch
      %25 = sbr.rel (0) target = $region17
    $region16: #{tpu_custom_call.1} parent=1 // pred_region
      _
    $region17: #{tpu_custom_call.1} parent=1 // pred_fallthru
      _
    // Predicated region
    $region18: #{tpu_custom_call.1} parent=1 // pred_check
      _
    $region19: #{tpu_custom_call.1} parent=1 // pred_check_branch
      %27 = sbr.rel (0) target = $region21
    $region20: #{tpu_custom_call.1} parent=1 // pred_region
      _
    $region21: #{tpu_custom_call.1} parent=1 // pred_fallthru
      _
    // Predicated region
    $region22: #{tpu_custom_call.1} parent=1 // pred_check
      _
    $region23: #{tpu_custom_call.1} parent=1 // pred_check_branch
      %29 = sbr.rel (0) target = $region25
    $region24: #{tpu_custom_call.1} parent=1 // pred_region
      _
    $region25: #{tpu_custom_call.1} parent=1 // pred_fallthru
      _
    // Predicated region
    $region26: #{tpu_custom_call.1} parent=1 // pred_check
      _
    $region27: #{tpu_custom_call.1} parent=1 // pred_check_branch
      %31 = sbr.rel (0) target = $region29
    $region28: #{tpu_custom_call.1} parent=1 // pred_region
      _
    $region29: #{tpu_custom_call.1} parent=1 // pred_fallthru
      _
    // Predicated region
    $region30: #{tpu_custom_call.1} parent=1 // pred_check
      _
    $region31: #{tpu_custom_call.1} parent=1 // pred_check_branch
      %33 = sbr.rel (0) target = $region33
    $region32: #{tpu_custom_call.1} parent=1 // pred_region
      _
    $region33: #{tpu_custom_call.1} parent=1 // pred_fallthru
      _
    // Predicated region
    $region34: #{tpu_custom_call.1} parent=1 // pred_check
      _
    $region35: #{tpu_custom_call.1} parent=1 // pred_check_branch
      %35 = sbr.rel (0) target = $region37
    $region36: #{tpu_custom_call.1} parent=1 // pred_region
      _
    $region37: #{tpu_custom_call.1} parent=1 // pred_fallthru
      _
    // Predicated region
    $region38: #{tpu_custom_call.1} parent=1 // pred_check
      _
    $region39: #{tpu_custom_call.1} parent=1 // pred_check_branch
      %37 = sbr.rel (0) target = $region41
    $region40: #{tpu_custom_call.1} parent=1 // pred_region
      _
    $region41: #{tpu_custom_call.1} parent=1 // pred_fallthru
      _
    // Predicated region
    $region42: #{tpu_custom_call.1} parent=1 // pred_check
      _
    $region43: #{tpu_custom_call.1} parent=1 // pred_check_branch
      %39 = sbr.rel (0) target = $region45
    $region44: #{tpu_custom_call.1} parent=1 // pred_region
      _
    $region45: #{tpu_custom_call.1} parent=1 // pred_fallthru
      _
    // Predicated region
    $region46: #{tpu_custom_call.1} parent=1 // pred_check
      _
    $region47: #{tpu_custom_call.1} parent=1 // pred_check_branch
      %41 = sbr.rel (0) target = $region49
    $region48: #{tpu_custom_call.1} parent=1 // pred_region
      _
    $region49: #{tpu_custom_call.1} parent=1 // pred_fallthru
      _
    %v42 = vld [vmem:[%s0] sm:$0xff]
    %v43 = vld [vmem:[%s0 + $0x8] sm:$0xff]
    %v44 = vld [vmem:[%s1] sm:$0xff]
    %v45 = vld [vmem:[%s1 + $0x8] sm:$0xff]
    %v46 = vld [vmem:[%s1 + $0x10] sm:$0xff]
    %v47 = vld [vmem:[%s1 + $0x18] sm:$0xff]
    %v48 = vld [vmem:[%s2] sm:$0x1]
    %v50 = vperm.slane %v48, 0
    %vm52 = vcmask 261120
    %v54 = vsel %vm52, %v42, 0
    %v57 = vsel %vm52, %v43, 0
    %59 = vmatpush.msra.mxu0 0.0
    %60 = vmatpush.msra.mxu0 0.0
    %61 = vmatpush.msra.mxu0 0.0
    %62 = vmatpush.msra.mxu0 0.0
    %63 = vmatpush.msra.mxu0 0.0
    %64 = vmatpush.msra.mxu0 0.0
    %65 = vmatpush.msra.mxu0 0.0
    %66 = vmatpush.msra.mxu0 0.0
    %67 = vmatpush.msra.mxu0 0.0
    %68 = vmatpush.msra.mxu0 0.0
    %69 = vmatpush.msra.mxu0 0.0
    %70 = vmatpush.msra.mxu0 0.0
    %71 = vmatpush.msra.mxu0 %v47
    %72 = vmatpush.msra.mxu0 %v46
    %73 = vmatpush.msra.mxu0 %v45
    %74 = vmatpush.msra.mxu0 %v44
    %75 = vmatmul.f32.gmra.mxu0 %v54
    %v76 = vpop.f32.mrf.mxu0
    %v77 = vadd.f32 %v50, %v76
    %78 = vmatmul.f32.gmra.mxu0 %v57
    %v79 = vpop.f32.mrf.mxu0
    %v80 = vadd.f32 %v50, %v79
    %81 = vdwg.mxu0
    %v82 = vld [vmem:[%s7] sm:$0xff]
    %84 = vset.pattern.permute.xlu0 0
    %85 = vperm.xlu0 %84, %v82
    %v86 = vpop.permute.xlu0 %85
    %v88 = vmul.f32 %v42, %v86
    %v89 = vmul.f32 %v43, %v86
    %v90 = vsel %vm52, %v88, 0.0
    %v91 = vrot.slane %v90, 4
    %v92 = vadd.f32 %v90, %v91
    %v93 = vrot.slane %v92, 2
    %v94 = vadd.f32 %v92, %v93
    %v95 = vrot.slane %v94, 1
    %v96 = vadd.f32 %v94, %v95
    %v97 = vsel %vm52, %v89, 0.0
    %v98 = vrot.slane %v97, 4
    %v99 = vadd.f32 %v97, %v98
    %v100 = vrot.slane %v99, 2
    %v101 = vadd.f32 %v99, %v100
    %v102 = vrot.slane %v101, 1
    %v103 = vadd.f32 %v101, %v102
    %v104 = vld [vmem:[%s3] sm:$0xff]
    %v105 = vld [vmem:[%s3 + $0x8] sm:$0xff]
    %v106 = vld [vmem:[%s3 + $0x10] sm:$0xff]
    %v107 = vld [vmem:[%s3 + $0x18] sm:$0xff]
    %v108 = vld [vmem:[%s4] sm:$0x1]
    %v110 = vperm.slane %v108, 0
    %vm114 = vcmask 1041409
    %v115 = vsel %vm114, %v103, %v96
    %v116 = vsel %vm52, %v115, 0
    %118 = vmatpush.msra.mxu0 0.0
    %119 = vmatpush.msra.mxu0 0.0
    %120 = vmatpush.msra.mxu0 0.0
    %121 = vmatpush.msra.mxu0 0.0
    %122 = vmatpush.msra.mxu0 0.0
    %123 = vmatpush.msra.mxu0 0.0
    %124 = vmatpush.msra.mxu0 0.0
    %125 = vmatpush.msra.mxu0 0.0
    %126 = vmatpush.msra.mxu0 0.0
    %127 = vmatpush.msra.mxu0 0.0
    %128 = vmatpush.msra.mxu0 0.0
    %129 = vmatpush.msra.mxu0 0.0
    %130 = vmatpush.msra.mxu0 %v107
    %131 = vmatpush.msra.mxu0 %v106
    %132 = vmatpush.msra.mxu0 %v105
    %133 = vmatpush.msra.mxu0 %v104
    %134 = vmatmul.f32.gmra.mxu0 %v116
    %v135 = vpop.f32.mrf.mxu0
    %v136 = vadd.f32 %v110, %v135
    %137 = vdwg.mxu0
    %v139 = vrot.slane %v136, 1
    %v140 = vperm.slane %v136, 0
    %v141 = vperm.slane %v139, 0
    %v144 = vmul.f32 %v77, %v140
    %v145 = vmul.f32 %v80, %v141
    %v146 = vld [vmem:[%s8] sm:$0xff]
    %v147 = vld [vmem:[%s8 + $0x8] sm:$0xff]
    %v148 = vld [vmem:[%s8 + $0x10] sm:$0xff]
    %v149 = vld [vmem:[%s8 + $0x18] sm:$0xff]
    %v150 = vld [vmem:[%s8 + $0x20] sm:$0xff]
    %v151 = vld [vmem:[%s8 + $0x28] sm:$0xff]
    %v152 = vld [vmem:[%s8 + $0x30] sm:$0xff]
    %v153 = vld [vmem:[%s8 + $0x38] sm:$0xff]
    %vm154 = vcmask 523264
    %v156 = vsel %vm154, %v144, 0
    %v159 = vsel %vm154, %v145, 0
    %161 = vmatpush.msra.mxu0 0.0
    %162 = vmatpush.msra.mxu0 0.0
    %163 = vmatpush.msra.mxu0 0.0
    %164 = vmatpush.msra.mxu0 0.0
    %165 = vmatpush.msra.mxu0 0.0
    %166 = vmatpush.msra.mxu0 0.0
    %167 = vmatpush.msra.mxu0 0.0
    %168 = vmatpush.msra.mxu0 0.0
    %169 = vmatpush.msra.mxu0 %v153
    %170 = vmatpush.msra.mxu0 %v152
    %171 = vmatpush.msra.mxu0 %v151
    %172 = vmatpush.msra.mxu0 %v150
    %173 = vmatpush.msra.mxu0 %v149
    %174 = vmatpush.msra.mxu0 %v148
    %175 = vmatpush.msra.mxu0 %v147
    %176 = vmatpush.msra.mxu0 %v146
    %177 = vmatmul.f32.gmra.mxu0 %v156
    %v178 = vpop.f32.mrf.mxu0
    %v179 = vadd.f32 0.0, %v178
    %180 = vmatmul.f32.gmra.mxu0 %v159
    %v181 = vpop.f32.mrf.mxu0
    %v182 = vadd.f32 0.0, %v181
    %183 = vdwg.mxu0
    %v184 = vmul.f32 %v179, 0.17677669
    %v185 = vmul.f32 %v182, 0.17677669
    %vm186 = vcmask 15360
    %v187 = vsel %vm186, %v184, -inf
    %v188 = vrot.slane %v187, 4
    %v189 = vmax.f32 %v187, %v188
    %v190 = vrot.slane %v189, 2
    %v191 = vmax.f32 %v189, %v190
    %v192 = vrot.slane %v191, 1
    %v193 = vmax.f32 %v191, %v192
    %v194 = vsel %vm186, %v185, -inf
    %v195 = vrot.slane %v194, 4
    %v196 = vmax.f32 %v194, %v195
    %v197 = vrot.slane %v196, 2
    %v198 = vmax.f32 %v196, %v197
    %v199 = vrot.slane %v198, 1
    %v200 = vmax.f32 %v198, %v199
    %v201 = vsub.f32 %v184, %v193
    %v202 = vsub.f32 %v185, %v200
    %v203 = vmul.f32 %v201, 1.442695
    %v204 = vpow.pop %v203
    %v205 = vmul.f32 %v202, 1.442695
    %v206 = vpow.pop %v205
    %v207 = vsel %vm186, %v204, 0.0
    %v208 = vrot.slane %v207, 4
    %v209 = vadd.f32 %v207, %v208
    %v210 = vrot.slane %v209, 2
    %v211 = vadd.f32 %v209, %v210
    %v212 = vrot.slane %v211, 1
    %v213 = vadd.f32 %v211, %v212
    %v214 = vsel %vm186, %v206, 0.0
    %v215 = vrot.slane %v214, 4
    %v216 = vadd.f32 %v214, %v215
    %v217 = vrot.slane %v216, 2
    %v218 = vadd.f32 %v216, %v217
    %v219 = vrot.slane %v218, 1
    %v220 = vadd.f32 %v218, %v219
    %v221 = vrcp.pop %v213
    %v222 = vrcp.pop %v220
    %v223 = vmul.f32 %v204, %v221
    %v224 = vmul.f32 %v206, %v222
    %v225 = vld [vmem:[%s9] sm:$0x3]
    %v227 = vsel %vm186, %v223, 0
    %v230 = vsel %vm186, %v224, 0
    %vm232 = vcmask 1041408
    %v234 = vsel %vm232, %v225, 0
    %236 = vmatpush.msra.mxu0 0.0
    %237 = vmatpush.msra.mxu0 0.0
    %238 = vmatpush.msra.mxu0 0.0
    %239 = vmatpush.msra.mxu0 0.0
    %240 = vmatpush.msra.mxu0 0.0
    %241 = vmatpush.msra.mxu0 0.0
    %242 = vmatpush.msra.mxu0 0.0
    %243 = vmatpush.msra.mxu0 0.0
    %244 = vmatpush.msra.mxu0 0.0
    %245 = vmatpush.msra.mxu0 0.0
    %246 = vmatpush.msra.mxu0 0.0
    %247 = vmatpush.msra.mxu0 0.0
    %248 = vmatpush.msra.mxu0 0.0
    %249 = vmatpush.msra.mxu0 0.0
    %250 = vmatpush.msra.mxu0 0.0
    %251 = vmatpush.msra.mxu0 %v234
    %252 = vmatmul.f32.gmra.mxu0 %v227
    %v253 = vpop.f32.mrf.mxu0
    %v254 = vadd.f32 0.0, %v253
    %255 = vmatmul.f32.gmra.mxu0 %v230
    %v256 = vpop.f32.mrf.mxu0
    %v257 = vadd.f32 0.0, %v256
    %258 = vdwg.mxu0
    %v259 = vld [vmem:[%s5] sm:$0xff]
    %v260 = vld [vmem:[%s5 + $0x8] sm:$0xff]
    %v261 = vld [vmem:[%s5 + $0x10] sm:$0xff]
    %v262 = vld [vmem:[%s5 + $0x18] sm:$0xff]
    %v263 = vld [vmem:[%s6] sm:$0x1]
    %v265 = vperm.slane %v263, 0
    %267 = vmatpush.msra.mxu0 0.0
    %268 = vmatpush.msra.mxu0 0.0
    %269 = vmatpush.msra.mxu0 0.0
    %270 = vmatpush.msra.mxu0 0.0
    %271 = vmatpush.msra.mxu0 0.0
    %272 = vmatpush.msra.mxu0 0.0
    %273 = vmatpush.msra.mxu0 0.0
    %274 = vmatpush.msra.mxu0 0.0
    %275 = vmatpush.msra.mxu0 0.0
    %276 = vmatpush.msra.mxu0 0.0
    %277 = vmatpush.msra.mxu0 0.0
    %278 = vmatpush.msra.mxu0 0.0
    %279 = vmatpush.msra.mxu0 %v262
    %280 = vmatpush.msra.mxu0 %v261
    %281 = vmatpush.msra.mxu0 %v260
    %282 = vmatpush.msra.mxu0 %v259
    %283 = vmatmul.f32.gmra.mxu0 %v54
    %v284 = vpop.f32.mrf.mxu0
    %v285 = vadd.f32 %v265, %v284
    %286 = vmatmul.f32.gmra.mxu0 %v57
    %v287 = vpop.f32.mrf.mxu0
    %v288 = vadd.f32 %v265, %v287
    %289 = vdwg.mxu0
    %v290 = vmul.f32 %v285, %v254
    %v291 = vmul.f32 %v288, %v257
    %v292 = vsel %vm154, %v290, 0.0
    %v293 = vrot.slane %v292, 4
    %v294 = vadd.f32 %v292, %v293
    %v295 = vrot.slane %v294, 2
    %v296 = vadd.f32 %v294, %v295
    %v297 = vrot.slane %v296, 1
    %v298 = vadd.f32 %v296, %v297
    %v299 = vsel %vm154, %v291, 0.0
    %v300 = vrot.slane %v299, 4
    %v301 = vadd.f32 %v299, %v300
    %v302 = vrot.slane %v301, 2
    %v303 = vadd.f32 %v301, %v302
    %v304 = vrot.slane %v303, 1
    %v305 = vadd.f32 %v303, %v304
    %v306 = vld [vmem:[%s10] sm:$0xff]
    %v307 = vld [vmem:[%s10 + $0x8] sm:$0xff]
    %v308 = vld [vmem:[%s10 + $0x10] sm:$0xff]
    %v309 = vld [vmem:[%s10 + $0x18] sm:$0xff]
    %v310 = vld [vmem:[%s10 + $0x20] sm:$0xff]
    %v311 = vld [vmem:[%s10 + $0x28] sm:$0xff]
    %v312 = vld [vmem:[%s10 + $0x30] sm:$0xff]
    %v313 = vld [vmem:[%s10 + $0x38] sm:$0xff]
    %v314 = vld [vmem:[%s11] sm:$0x1]
    %v316 = vperm.slane %v314, 0
    %v320 = vsel %vm114, %v305, %v298
    %v321 = vsel %vm154, %v320, 0
    %323 = vmatpush.msra.mxu0 0.0
    %324 = vmatpush.msra.mxu0 0.0
    %325 = vmatpush.msra.mxu0 0.0
    %326 = vmatpush.msra.mxu0 0.0
    %327 = vmatpush.msra.mxu0 0.0
    %328 = vmatpush.msra.mxu0 0.0
    %329 = vmatpush.msra.mxu0 0.0
    %330 = vmatpush.msra.mxu0 0.0
    %331 = vmatpush.msra.mxu0 %v313
    %332 = vmatpush.msra.mxu0 %v312
    %333 = vmatpush.msra.mxu0 %v311
    %334 = vmatpush.msra.mxu0 %v310
    %335 = vmatpush.msra.mxu0 %v309
    %336 = vmatpush.msra.mxu0 %v308
    %337 = vmatpush.msra.mxu0 %v307
    %338 = vmatpush.msra.mxu0 %v306
    %339 = vmatmul.f32.gmra.mxu0 %v321
    %v340 = vpop.f32.mrf.mxu0
    %v341 = vadd.f32 %v316, %v340
    %342 = vdwg.mxu0
    %vm343 = vcmask 254976
    %344 = vst.msk [vmem:[#allocation2] sm:$0x3] %vm343, %v341
    // Predicated region
    $region50: #{tpu_custom_call.1} parent=1 // pred_check
      _
    $region51: #{tpu_custom_call.1} parent=1 // pred_check_branch
      %346 = sbr.rel (0) target = $region53
    $region52: #{tpu_custom_call.1} parent=1 // pred_region
      %348 = vsyncadd [#allocation3], 0
      %s350 = sshll.u32 [#allocation2], 4
      %s351 = int_to_ptr.vmem [resolvable:$true] %s350
      %s352 = sshll.u32 %s12, 4
      %s353 = int_to_ptr.hbm [resolvable:$true] %s352
      %355 = dma.vmem_to_hbm [thread:$0]  %s351, 32, %s353, [#allocation3]
    $region53: #{tpu_custom_call.1} parent=1 // pred_fallthru
      _
    // Predicated region
    $region54: #{tpu_custom_call.1} parent=1 // pred_check
      _
    $region55: #{tpu_custom_call.1} parent=1 // pred_check_branch
      %357 = sbr.rel (0) target = $region57
    $region56: #{tpu_custom_call.1} parent=1 // pred_region
      %359 = dma.done [#allocation3], 32
    $region57: #{tpu_custom_call.1} parent=1 // pred_fallthru
      _
    %360 = vsyncpa [#allocation3], 1

// kernel: tpu_custom_call.1
$region0: #{tpu_custom_call.1}
  #allocation0 [shape = 'u32[]', space=smem, size = 0x4, offset = 0x4, fixed_abs, tag = 'smem constant byte address 0x4 - core index']
  #allocation1 [shape = 'u32[72,128]{1,0:T(1,128)}', space=vmem, size = 0x9000, scoped, tag = 'internal scratch']
  %s0 = inlined_call_operand.vmem [shape: f32[2,8,32], index: 0, kind: input, shape index: {}]
  %s1 = inlined_call_operand.vmem [shape: f32[32,64], index: 1, kind: input, shape index: {}]
  %s2 = inlined_call_operand.vmem [shape: f32[1,64], index: 2, kind: input, shape index: {}]
  %s3 = inlined_call_operand.vmem [shape: f32[32,64], index: 3, kind: input, shape index: {}]
  %s4 = inlined_call_operand.vmem [shape: f32[1,64], index: 4, kind: input, shape index: {}]
  %s5 = inlined_call_operand.vmem [shape: f32[32,64], index: 5, kind: input, shape index: {}]
  %s6 = inlined_call_operand.vmem [shape: f32[1,64], index: 6, kind: input, shape index: {}]
  %s7 = inlined_call_operand.vmem [shape: f32[8,1], index: 7, kind: input, shape index: {}]
  %s8 = inlined_call_operand.vmem [shape: f32[64,2], index: 8, kind: input, shape index: {}]
  %s9 = inlined_call_operand.vmem [shape: f32[2,64], index: 9, kind: input, shape index: {}]
  %s10 = inlined_call_operand.vmem [shape: f32[64,32], index: 10, kind: input, shape index: {}]
  %s11 = inlined_call_operand.vmem [shape: f32[1,32], index: 11, kind: input, shape index: {}]
  %s12 = inlined_call_operand.hbm [shape: f32[2,32], index: 12, kind: output, shape index: {}]
  %s13 = sld [smem:[#allocation0]]
  $region58: #{tpu_custom_call.1} parent=0
    _
  %s15 = ssub.s32 1, %s13
  %s16 = scalar_select 0, %s15, %s13
  $region1: #{tpu_custom_call.1} parent=0
    #allocation2 [shape = 'u8[1024]{0}', space=vmem, size = 0x400, scoped, tag = 'output window, operand 0, single buffered']
    #allocation3 [shape = 's32[1]{0}', space=sflag, size = 0x4, scoped, tag = 'scoped memory for tpu_custom_call.1']
    %17 = vsyncpa [#allocation3], 0
    // Predicated region
    $region2: #{tpu_custom_call.1} parent=1 // pred_check
      _
    $region3: #{tpu_custom_call.1} parent=1 // pred_check_branch
      %19 = sbr.rel (0) target = $region5
    $region4: #{tpu_custom_call.1} parent=1 // pred_region
      _
    $region5: #{tpu_custom_call.1} parent=1 // pred_fallthru
      _
    // Predicated region
    $region6: #{tpu_custom_call.1} parent=1 // pred_check
      _
    $region7: #{tpu_custom_call.1} parent=1 // pred_check_branch
      %21 = sbr.rel (0) target = $region9
    $region8: #{tpu_custom_call.1} parent=1 // pred_region
      _
    $region9: #{tpu_custom_call.1} parent=1 // pred_fallthru
      _
    // Predicated region
    $region10: #{tpu_custom_call.1} parent=1 // pred_check
      _
    $region11: #{tpu_custom_call.1} parent=1 // pred_check_branch
      %23 = sbr.rel (0) target = $region13
    $region12: #{tpu_custom_call.1} parent=1 // pred_region
      _
    $region13: #{tpu_custom_call.1} parent=1 // pred_fallthru
      _
    // Predicated region
    $region14: #{tpu_custom_call.1} parent=1 // pred_check
      _
    $region15: #{tpu_custom_call.1} parent=1 // pred_check_branch
      %25 = sbr.rel (0) target = $region17
    $region16: #{tpu_custom_call.1} parent=1 // pred_region
      _
    $region17: #{tpu_custom_call.1} parent=1 // pred_fallthru
      _
    // Predicated region
    $region18: #{tpu_custom_call.1} parent=1 // pred_check
      _
    $region19: #{tpu_custom_call.1} parent=1 // pred_check_branch
      %27 = sbr.rel (0) target = $region21
    $region20: #{tpu_custom_call.1} parent=1 // pred_region
      _
    $region21: #{tpu_custom_call.1} parent=1 // pred_fallthru
      _
    // Predicated region
    $region22: #{tpu_custom_call.1} parent=1 // pred_check
      _
    $region23: #{tpu_custom_call.1} parent=1 // pred_check_branch
      %29 = sbr.rel (0) target = $region25
    $region24: #{tpu_custom_call.1} parent=1 // pred_region
      _
    $region25: #{tpu_custom_call.1} parent=1 // pred_fallthru
      _
    // Predicated region
    $region26: #{tpu_custom_call.1} parent=1 // pred_check
      _
    $region27: #{tpu_custom_call.1} parent=1 // pred_check_branch
      %31 = sbr.rel (0) target = $region29
    $region28: #{tpu_custom_call.1} parent=1 // pred_region
      _
    $region29: #{tpu_custom_call.1} parent=1 // pred_fallthru
      _
    // Predicated region
    $region30: #{tpu_custom_call.1} parent=1 // pred_check
      _
    $region31: #{tpu_custom_call.1} parent=1 // pred_check_branch
      %33 = sbr.rel (0) target = $region33
    $region32: #{tpu_custom_call.1} parent=1 // pred_region
      _
    $region33: #{tpu_custom_call.1} parent=1 // pred_fallthru
      _
    // Predicated region
    $region34: #{tpu_custom_call.1} parent=1 // pred_check
      _
    $region35: #{tpu_custom_call.1} parent=1 // pred_check_branch
      %35 = sbr.rel (0) target = $region37
    $region36: #{tpu_custom_call.1} parent=1 // pred_region
      _
    $region37: #{tpu_custom_call.1} parent=1 // pred_fallthru
      _
    // Predicated region
    $region38: #{tpu_custom_call.1} parent=1 // pred_check
      _
    $region39: #{tpu_custom_call.1} parent=1 // pred_check_branch
      %37 = sbr.rel (0) target = $region41
    $region40: #{tpu_custom_call.1} parent=1 // pred_region
      _
    $region41: #{tpu_custom_call.1} parent=1 // pred_fallthru
      _
    // Predicated region
    $region42: #{tpu_custom_call.1} parent=1 // pred_check
      _
    $region43: #{tpu_custom_call.1} parent=1 // pred_check_branch
      %39 = sbr.rel (0) target = $region45
    $region44: #{tpu_custom_call.1} parent=1 // pred_region
      _
    $region45: #{tpu_custom_call.1} parent=1 // pred_fallthru
      _
    // Predicated region
    $region46: #{tpu_custom_call.1} parent=1 // pred_check
      _
    $region47: #{tpu_custom_call.1} parent=1 // pred_check_branch
      %41 = sbr.rel (0) target = $region49
    $region48: #{tpu_custom_call.1} parent=1 // pred_region
      _
    $region49: #{tpu_custom_call.1} parent=1 // pred_fallthru
      _
    %v42 = vld [vmem:[%s0] sm:$0xff]
    %v43 = vld [vmem:[%s0 + $0x8] sm:$0xff]
    %v44 = vld [vmem:[%s1] sm:$0xff]
    %v45 = vld [vmem:[%s1 + $0x8] sm:$0xff]
    %v46 = vld [vmem:[%s1 + $0x10] sm:$0xff]
    %v47 = vld [vmem:[%s1 + $0x18] sm:$0xff]
    %v48 = vld [vmem:[%s2] sm:$0x1]
    %v50 = vperm.slane %v48, 0
    %vm52 = vcmask 261120
    %v54 = vsel %vm52, %v42, 0
    %v57 = vsel %vm52, %v43, 0
    %59 = vmatpush.msra.mxu0 0.0
    %60 = vmatpush.msra.mxu0 0.0
    %61 = vmatpush.msra.mxu0 0.0
    %62 = vmatpush.msra.mxu0 0.0
    %63 = vmatpush.msra.mxu0 0.0
    %64 = vmatpush.msra.mxu0 0.0
    %65 = vmatpush.msra.mxu0 0.0
    %66 = vmatpush.msra.mxu0 0.0
    %67 = vmatpush.msra.mxu0 0.0
    %68 = vmatpush.msra.mxu0 0.0
    %69 = vmatpush.msra.mxu0 0.0
    %70 = vmatpush.msra.mxu0 0.0
    %71 = vmatpush.msra.mxu0 %v47
    %72 = vmatpush.msra.mxu0 %v46
    %73 = vmatpush.msra.mxu0 %v45
    %74 = vmatpush.msra.mxu0 %v44
    %75 = vmatmul.f32.gmra.mxu0 %v54
    %v76 = vpop.f32.mrf.mxu0
    %v77 = vadd.f32 %v50, %v76
    %78 = vmatmul.f32.gmra.mxu0 %v57
    %v79 = vpop.f32.mrf.mxu0
    %v80 = vadd.f32 %v50, %v79
    %81 = vdwg.mxu0
    %v82 = vld [vmem:[%s7] sm:$0xff]
    %84 = vset.pattern.permute.xlu0 0
    %85 = vperm.xlu0 %84, %v82
    %v86 = vpop.permute.xlu0 %85
    %v88 = vmul.f32 %v42, %v86
    %v89 = vmul.f32 %v43, %v86
    %v90 = vsel %vm52, %v88, 0.0
    %v91 = vrot.slane %v90, 4
    %v92 = vadd.f32 %v90, %v91
    %v93 = vrot.slane %v92, 2
    %v94 = vadd.f32 %v92, %v93
    %v95 = vrot.slane %v94, 1
    %v96 = vadd.f32 %v94, %v95
    %v97 = vsel %vm52, %v89, 0.0
    %v98 = vrot.slane %v97, 4
    %v99 = vadd.f32 %v97, %v98
    %v100 = vrot.slane %v99, 2
    %v101 = vadd.f32 %v99, %v100
    %v102 = vrot.slane %v101, 1
    %v103 = vadd.f32 %v101, %v102
    %v104 = vld [vmem:[%s3] sm:$0xff]
    %v105 = vld [vmem:[%s3 + $0x8] sm:$0xff]
    %v106 = vld [vmem:[%s3 + $0x10] sm:$0xff]
    %v107 = vld [vmem:[%s3 + $0x18] sm:$0xff]
    %v108 = vld [vmem:[%s4] sm:$0x1]
    %v110 = vperm.slane %v108, 0
    %vm114 = vcmask 1041409
    %v115 = vsel %vm114, %v103, %v96
    %v116 = vsel %vm52, %v115, 0
    %118 = vmatpush.msra.mxu0 0.0
    %119 = vmatpush.msra.mxu0 0.0
    %120 = vmatpush.msra.mxu0 0.0
    %121 = vmatpush.msra.mxu0 0.0
    %122 = vmatpush.msra.mxu0 0.0
    %123 = vmatpush.msra.mxu0 0.0
    %124 = vmatpush.msra.mxu0 0.0
    %125 = vmatpush.msra.mxu0 0.0
    %126 = vmatpush.msra.mxu0 0.0
    %127 = vmatpush.msra.mxu0 0.0
    %128 = vmatpush.msra.mxu0 0.0
    %129 = vmatpush.msra.mxu0 0.0
    %130 = vmatpush.msra.mxu0 %v107
    %131 = vmatpush.msra.mxu0 %v106
    %132 = vmatpush.msra.mxu0 %v105
    %133 = vmatpush.msra.mxu0 %v104
    %134 = vmatmul.f32.gmra.mxu0 %v116
    %v135 = vpop.f32.mrf.mxu0
    %v136 = vadd.f32 %v110, %v135
    %137 = vdwg.mxu0
    %v139 = vrot.slane %v136, 1
    %v140 = vperm.slane %v136, 0
    %v141 = vperm.slane %v139, 0
    %v144 = vmul.f32 %v77, %v140
    %v145 = vmul.f32 %v80, %v141
    %v146 = vld [vmem:[%s8] sm:$0xff]
    %v147 = vld [vmem:[%s8 + $0x8] sm:$0xff]
    %v148 = vld [vmem:[%s8 + $0x10] sm:$0xff]
    %v149 = vld [vmem:[%s8 + $0x18] sm:$0xff]
    %v150 = vld [vmem:[%s8 + $0x20] sm:$0xff]
    %v151 = vld [vmem:[%s8 + $0x28] sm:$0xff]
    %v152 = vld [vmem:[%s8 + $0x30] sm:$0xff]
    %v153 = vld [vmem:[%s8 + $0x38] sm:$0xff]
    %vm154 = vcmask 523264
    %v156 = vsel %vm154, %v144, 0
    %v159 = vsel %vm154, %v145, 0
    %161 = vmatpush.msra.mxu0 0.0
    %162 = vmatpush.msra.mxu0 0.0
    %163 = vmatpush.msra.mxu0 0.0
    %164 = vmatpush.msra.mxu0 0.0
    %165 = vmatpush.msra.mxu0 0.0
    %166 = vmatpush.msra.mxu0 0.0
    %167 = vmatpush.msra.mxu0 0.0
    %168 = vmatpush.msra.mxu0 0.0
    %169 = vmatpush.msra.mxu0 %v153
    %170 = vmatpush.msra.mxu0 %v152
    %171 = vmatpush.msra.mxu0 %v151
    %172 = vmatpush.msra.mxu0 %v150
    %173 = vmatpush.msra.mxu0 %v149
    %174 = vmatpush.msra.mxu0 %v148
    %175 = vmatpush.msra.mxu0 %v147
    %176 = vmatpush.msra.mxu0 %v146
    %177 = vmatmul.f32.gmra.mxu0 %v156
    %v178 = vpop.f32.mrf.mxu0
    %v179 = vadd.f32 0.0, %v178
    %180 = vmatmul.f32.gmra.mxu0 %v159
    %v181 = vpop.f32.mrf.mxu0
    %v182 = vadd.f32 0.0, %v181
    %183 = vdwg.mxu0
    %v184 = vmul.f32 %v179, 0.17677669
    %v185 = vmul.f32 %v182, 0.17677669
    %vm186 = vcmask 15360
    %v187 = vsel %vm186, %v184, -inf
    %v188 = vrot.slane %v187, 4
    %v189 = vmax.f32 %v187, %v188
    %v190 = vrot.slane %v189, 2
    %v191 = vmax.f32 %v189, %v190
    %v192 = vrot.slane %v191, 1
    %v193 = vmax.f32 %v191, %v192
    %v194 = vsel %vm186, %v185, -inf
    %v195 = vrot.slane %v194, 4
    %v196 = vmax.f32 %v194, %v195
    %v197 = vrot.slane %v196, 2
    %v198 = vmax.f32 %v196, %v197
    %v199 = vrot.slane %v198, 1
    %v200 = vmax.f32 %v198, %v199
    %v201 = vsub.f32 %v184, %v193
    %v202 = vsub.f32 %v185, %v200
    %v203 = vmul.f32 %v201, 1.442695
    %v204 = vpow.pop %v203
    %v205 = vmul.f32 %v202, 1.442695
    %v206 = vpow.pop %v205
    %v207 = vsel %vm186, %v204, 0.0
    %v208 = vrot.slane %v207, 4
    %v209 = vadd.f32 %v207, %v208
    %v210 = vrot.slane %v209, 2
    %v211 = vadd.f32 %v209, %v210
    %v212 = vrot.slane %v211, 1
    %v213 = vadd.f32 %v211, %v212
    %v214 = vsel %vm186, %v206, 0.0
    %v215 = vrot.slane %v214, 4
    %v216 = vadd.f32 %v214, %v215
    %v217 = vrot.slane %v216, 2
    %v218 = vadd.f32 %v216, %v217
    %v219 = vrot.slane %v218, 1
    %v220 = vadd.f32 %v218, %v219
    %v221 = vrcp.pop %v213
    %v222 = vrcp.pop %v220
    %v223 = vmul.f32 %v204, %v221
    %v224 = vmul.f32 %v206, %v222
    %v225 = vld [vmem:[%s9] sm:$0x3]
    %v227 = vsel %vm186, %v223, 0
    %v230 = vsel %vm186, %v224, 0
    %vm232 = vcmask 1041408
    %v234 = vsel %vm232, %v225, 0
    %236 = vmatpush.msra.mxu0 0.0
    %237 = vmatpush.msra.mxu0 0.0
    %238 = vmatpush.msra.mxu0 0.0
    %239 = vmatpush.msra.mxu0 0.0
    %240 = vmatpush.msra.mxu0 0.0
    %241 = vmatpush.msra.mxu0 0.0
    %242 = vmatpush.msra.mxu0 0.0
    %243 = vmatpush.msra.mxu0 0.0
    %244 = vmatpush.msra.mxu0 0.0
    %245 = vmatpush.msra.mxu0 0.0
    %246 = vmatpush.msra.mxu0 0.0
    %247 = vmatpush.msra.mxu0 0.0
    %248 = vmatpush.msra.mxu0 0.0
    %249 = vmatpush.msra.mxu0 0.0
    %250 = vmatpush.msra.mxu0 0.0
    %251 = vmatpush.msra.mxu0 %v234
    %252 = vmatmul.f32.gmra.mxu0 %v227
    %v253 = vpop.f32.mrf.mxu0
    %v254 = vadd.f32 0.0, %v253
    %255 = vmatmul.f32.gmra.mxu0 %v230
    %v256 = vpop.f32.mrf.mxu0
    %v257 = vadd.f32 0.0, %v256
    %258 = vdwg.mxu0
    %v259 = vld [vmem:[%s5] sm:$0xff]
    %v260 = vld [vmem:[%s5 + $0x8] sm:$0xff]
    %v261 = vld [vmem:[%s5 + $0x10] sm:$0xff]
    %v262 = vld [vmem:[%s5 + $0x18] sm:$0xff]
    %v263 = vld [vmem:[%s6] sm:$0x1]
    %v265 = vperm.slane %v263, 0
    %267 = vmatpush.msra.mxu0 0.0
    %268 = vmatpush.msra.mxu0 0.0
    %269 = vmatpush.msra.mxu0 0.0
    %270 = vmatpush.msra.mxu0 0.0
    %271 = vmatpush.msra.mxu0 0.0
    %272 = vmatpush.msra.mxu0 0.0
    %273 = vmatpush.msra.mxu0 0.0
    %274 = vmatpush.msra.mxu0 0.0
    %275 = vmatpush.msra.mxu0 0.0
    %276 = vmatpush.msra.mxu0 0.0
    %277 = vmatpush.msra.mxu0 0.0
    %278 = vmatpush.msra.mxu0 0.0
    %279 = vmatpush.msra.mxu0 %v262
    %280 = vmatpush.msra.mxu0 %v261
    %281 = vmatpush.msra.mxu0 %v260
    %282 = vmatpush.msra.mxu0 %v259
    %283 = vmatmul.f32.gmra.mxu0 %v54
    %v284 = vpop.f32.mrf.mxu0
    %v285 = vadd.f32 %v265, %v284
    %286 = vmatmul.f32.gmra.mxu0 %v57
    %v287 = vpop.f32.mrf.mxu0
    %v288 = vadd.f32 %v265, %v287
    %289 = vdwg.mxu0
    %v290 = vmul.f32 %v285, %v254
    %v291 = vmul.f32 %v288, %v257
    %v292 = vsel %vm154, %v290, 0.0
    %v293 = vrot.slane %v292, 4
    %v294 = vadd.f32 %v292, %v293
    %v295 = vrot.slane %v294, 2
    %v296 = vadd.f32 %v294, %v295
    %v297 = vrot.slane %v296, 1
    %v298 = vadd.f32 %v296, %v297
    %v299 = vsel %vm154, %v291, 0.0
    %v300 = vrot.slane %v299, 4
    %v301 = vadd.f32 %v299, %v300
    %v302 = vrot.slane %v301, 2
    %v303 = vadd.f32 %v301, %v302
    %v304 = vrot.slane %v303, 1
    %v305 = vadd.f32 %v303, %v304
    %v306 = vld [vmem:[%s10] sm:$0xff]
    %v307 = vld [vmem:[%s10 + $0x8] sm:$0xff]
    %v308 = vld [vmem:[%s10 + $0x10] sm:$0xff]
    %v309 = vld [vmem:[%s10 + $0x18] sm:$0xff]
    %v310 = vld [vmem:[%s10 + $0x20] sm:$0xff]
    %v311 = vld [vmem:[%s10 + $0x28] sm:$0xff]
    %v312 = vld [vmem:[%s10 + $0x30] sm:$0xff]
    %v313 = vld [vmem:[%s10 + $0x38] sm:$0xff]
    %v314 = vld [vmem:[%s11] sm:$0x1]
    %v316 = vperm.slane %v314, 0
    %v320 = vsel %vm114, %v305, %v298
    %v321 = vsel %vm154, %v320, 0
    %323 = vmatpush.msra.mxu0 0.0
    %324 = vmatpush.msra.mxu0 0.0
    %325 = vmatpush.msra.mxu0 0.0
    %326 = vmatpush.msra.mxu0 0.0
    %327 = vmatpush.msra.mxu0 0.0
    %328 = vmatpush.msra.mxu0 0.0
    %329 = vmatpush.msra.mxu0 0.0
    %330 = vmatpush.msra.mxu0 0.0
    %331 = vmatpush.msra.mxu0 %v313
    %332 = vmatpush.msra.mxu0 %v312
    %333 = vmatpush.msra.mxu0 %v311
    %334 = vmatpush.msra.mxu0 %v310
    %335 = vmatpush.msra.mxu0 %v309
    %336 = vmatpush.msra.mxu0 %v308
    %337 = vmatpush.msra.mxu0 %v307
    %338 = vmatpush.msra.mxu0 %v306
    %339 = vmatmul.f32.gmra.mxu0 %v321
    %v340 = vpop.f32.mrf.mxu0
    %v341 = vadd.f32 %v316, %v340
    %342 = vdwg.mxu0
    %vm343 = vcmask 254976
    %344 = vst.msk [vmem:[#allocation2] sm:$0x3] %vm343, %v341
    // Predicated region
    $region50: #{tpu_custom_call.1} parent=1 // pred_check
      _
    $region51: #{tpu_custom_call.1} parent=1 // pred_check_branch
      %346 = sbr.rel (0) target = $region53
    $region52: #{tpu_custom_call.1} parent=1 // pred_region
      %348 = vsyncadd [#allocation3], 0
      %s350 = sshll.u32 [#allocation2], 4
      %s351 = int_to_ptr.vmem [resolvable:$true] %s350
      %s352 = sshll.u32 %s12, 4
      %s353 = int_to_ptr.hbm [resolvable:$true] %s352
      %355 = dma.vmem_to_hbm [thread:$0]  %s351, 32, %s353, [#allocation3]
    $region53: #{tpu_custom_call.1} parent=1 // pred_fallthru
      _
    // Predicated region
    $region54: #{tpu_custom_call.1} parent=1 // pred_check
      _
    $region55: #{tpu_custom_call.1} parent=1 // pred_check_branch
      %357 = sbr.rel (0) target = $region57
    $region56: #{tpu_custom_call.1} parent=1 // pred_region
      %359 = dma.done [#allocation3], 32
    $region57: #{tpu_custom_call.1} parent=1 // pred_fallthru
      _
    %360 = vsyncpa [#allocation3], 1

</llo_original>
